<compile_context>
chip_gen: v5e
topology: v5e:2x2
jax: 0.10.0
libtpu: 0.0.40
codegen_flags: <defaults>
</compile_context>

<pallas_src>
import functools

import jax
import jax.numpy as jnp
from jax.experimental import pallas as pl
from jax.experimental.pallas import tpu as pltpu


# ----------------------------------------------------------------------------
# Fused kernel: match + top-k(smallest) + similarity + prompt gather + counter
# ----------------------------------------------------------------------------
def _prompt_kernel(q_ref, k_ref, p_ref, sim_ref, sel_ref, cnt_ref, *, selection_size):
    S = selection_size
    q = q_ref[...]                                   # [B, D] native dtype into MXU
    k = k_ref[...]                                   # [P, D]
    B, _ = q.shape
    P, _ = k.shape

    # cosine similarity.  PyTorch clamps each norm at eps=1e-8:
    #   max(sqrt(x), 1e-8) == sqrt(max(x, 1e-16))  ->  1/that == rsqrt(max(x, 1e-16))
    # rsqrt runs on the EUP (its own VLIW slot); pre-scaling the operands avoids
    # a transposed broadcast in the epilogue.  Norm/epilogue math stays f32.
    qf = q.astype(jnp.float32)
    kf = k.astype(jnp.float32)
    inv_qn = jax.lax.rsqrt(jnp.maximum(jnp.sum(qf * qf, axis=-1, keepdims=True), 1e-16))
    inv_kn = jax.lax.rsqrt(jnp.maximum(jnp.sum(kf * kf, axis=-1, keepdims=True), 1e-16))
    cos = jax.lax.dot_general(
        (qf * inv_qn).astype(q.dtype), (kf * inv_kn).astype(k.dtype),
        (((1,), (1,)), ((), ())),                    # contract feature dim of both
        preferred_element_type=jnp.float32)          # [B, P]  (MXU, f32 accumulate)
    match = 1.0 - cos                                # [B, P] f32

    # top-S smallest over P: S unrolled argmin passes on the VPU (P is tiny).
    col = jax.lax.broadcasted_iota(jnp.int32, (B, P), 1)
    work = match
    sim_cols = []
    onehots = []
    for _ in range(S):                               # S is static -> fully unrolled
        min_val = jnp.min(work, axis=-1, keepdims=True)                      # [B, 1]
        is_min = work == min_val
        # first occurrence wins on exact ties (matches argmin tie-breaking)
        first_idx = jnp.min(jnp.where(is_min, col, P), axis=-1, keepdims=True)
        sel_mask = col == first_idx                                          # [B, P]
        sim_cols.append(min_val)
        onehots.append(sel_mask.astype(jnp.float32))
        work = jnp.where(sel_mask, jnp.inf, work)

    # similarity: one [B, S] store.
    sim_ref[...] = jnp.concatenate(sim_cols, axis=1).astype(sim_ref.dtype)

    # counter increment: column sums of the one-hot selection matrix.
    onehot_sb = jnp.concatenate(onehots, axis=0)                             # [S*B, P]
    cnt_ref[...] = jnp.sum(onehot_sb, axis=0, keepdims=True).astype(cnt_ref.dtype)

    # prompt gather as a one-hot matmul against the VMEM-resident pool (exact:
    # one-hot rows select a single prompt row, f32 accumulation).
    sel_ref[...] = jax.lax.dot_general(
        onehot_sb.astype(p_ref.dtype), p_ref[...],
        (((1,), (0,)), ((), ())),
        preferred_element_type=jnp.float32).astype(sel_ref.dtype)            # [S*B, L*D]


def _vmem_spec():
    return pl.BlockSpec(memory_space=pltpu.MemorySpace.VMEM)


# ----------------------------------------------------------------------------
# Wrapper (all heavy lifting is inside the single pallas_call)
# ----------------------------------------------------------------------------
@functools.partial(jax.jit, static_argnames=("selection_size",))
def prompt_forward(query, key_param, prompts, *, selection_size):
    B, D = query.shape
    P, L, Dp = prompts.shape
    S = selection_size
    prompts_2d = prompts.reshape(P, L * Dp)          # lane-dense slab for the kernel

    sim, sel_sb, cnt = pl.pallas_call(
        functools.partial(_prompt_kernel, selection_size=S),
        out_shape=(
            jax.ShapeDtypeStruct((B, S), jnp.float32),
            jax.ShapeDtypeStruct((S * B, L * Dp), prompts.dtype),
            jax.ShapeDtypeStruct((1, P), jnp.float32),
        ),
        in_specs=[_vmem_spec(), _vmem_spec(), _vmem_spec()],
        out_specs=(_vmem_spec(), _vmem_spec(), _vmem_spec()),
    )(query, key_param, prompts_2d)

    # [S*B, L*D] (s-major) -> [B, S, L, D]; trivial XLA reshape/transpose.
    selection = sel_sb.reshape(S, B, L, Dp).transpose(1, 0, 2, 3)
    counter_inc = cnt[0]
    # TODO(synk): self.counter += bincount(...) mutates module state; we return
    # the increment instead.  Training-only branches (_diversed_selection,
    # _batchwise_selection) are not implemented (eval-mode forward).
    return sim, selection, counter_inc


if __name__ == "__main__":
    # Small shapes consistent with the module.
    B = 2            # batch
    D = 32           # dimention
    P = 10           # pool_size
    S = 4            # selection_size
    L = 5            # prompt_len

    root = jax.random.PRNGKey(0)
    k_q, k_key, k_prompt = jax.random.split(root, 3)

    # Deterministic parameter init matching torch.nn.init.uniform_(-1, 1).
    key_param = jax.random.uniform(k_key, (P, D), jnp.float32, -1.0, 1.0)
    prompts = jax.random.uniform(k_prompt, (P, L, D), jnp.float32, -1.0, 1.0)
    query = jax.random.normal(k_q, (B, D), jnp.float32)

    similarity, selection, counter_inc = prompt_forward(
        query, key_param, prompts, selection_size=S
    )
    jax.block_until_ready((similarity, selection, counter_inc))

    # Sanity check against a pure-JAX reference (PyTorch semantics).
    qn = jnp.maximum(jnp.linalg.norm(query, axis=-1, keepdims=True), 1e-8)
    kn = jnp.maximum(jnp.linalg.norm(key_param, axis=-1, keepdims=True), 1e-8)
    match_ref = 1.0 - (query @ key_param.T) / (qn * kn.T)
    _, topk_ref = jax.lax.top_k(-match_ref, S)
    sim_ref = jnp.take_along_axis(match_ref, topk_ref, axis=1)
    sel_ref = prompts[topk_ref]
    cnt_ref = jnp.bincount(topk_ref.reshape(-1), length=P).astype(jnp.float32)

    assert similarity.shape == (B, S)
    assert selection.shape == (B, S, L, D)
    assert counter_inc.shape == (P,)
    assert jnp.allclose(similarity, sim_ref, atol=1e-5), "similarity mismatch"
    assert jnp.allclose(selection, sel_ref, atol=1e-6), "selection mismatch"
    assert jnp.allclose(counter_inc, cnt_ref), "counter mismatch"

    print("KERNEL_OK")
</pallas_src>

<mosaic_0001>
module attributes {stable_mosaic.version = 11 : i64} {
  func.func @_prompt_kernel(%arg0: memref<2x32xf32, #tpu.memory_space<vmem>>, %arg1: memref<10x32xf32, #tpu.memory_space<vmem>>, %arg2: memref<10x160xf32, #tpu.memory_space<vmem>>, %arg3: memref<2x4xf32, #tpu.memory_space<vmem>>, %arg4: memref<8x160xf32, #tpu.memory_space<vmem>>, %arg5: memref<1x10xf32, #tpu.memory_space<vmem>>) attributes {dimension_semantics = [], scalar_prefetch = 0 : i64, scratch_operands = 0 : i64, tpu.core_type = #tpu.core_type<tc>} {
    %c0 = arith.constant 0 : index
    %c0_0 = arith.constant 0 : index
    %0 = vector.load %arg0[%c0, %c0_0] : memref<2x32xf32, #tpu.memory_space<vmem>>, vector<2x32xf32>
    %c0_1 = arith.constant 0 : index
    %c0_2 = arith.constant 0 : index
    %1 = vector.load %arg1[%c0_1, %c0_2] : memref<10x32xf32, #tpu.memory_space<vmem>>, vector<10x32xf32>
    %2 = arith.mulf %0, %0 : vector<2x32xf32>
    %cst = arith.constant dense<0.000000e+00> : vector<2xf32>
    %3 = vector.multi_reduction <add>, %2, %cst [1] : vector<2x32xf32> to vector<2xf32>
    %4 = vector.shape_cast %3 : vector<2xf32> to vector<2x1xf32>
    %cst_3 = arith.constant 1.000000e-16 : f32
    %5 = vector.broadcast %cst_3 : f32 to vector<2x1xf32>
    %6 = arith.maximumf %4, %5 : vector<2x1xf32>
    %7 = math.rsqrt %6 : vector<2x1xf32>
    %8 = arith.mulf %1, %1 : vector<10x32xf32>
    %cst_4 = arith.constant dense<0.000000e+00> : vector<10xf32>
    %9 = vector.multi_reduction <add>, %8, %cst_4 [1] : vector<10x32xf32> to vector<10xf32>
    %10 = vector.shape_cast %9 : vector<10xf32> to vector<10x1xf32>
    %cst_5 = arith.constant 1.000000e-16 : f32
    %11 = vector.broadcast %cst_5 : f32 to vector<10x1xf32>
    %12 = arith.maximumf %10, %11 : vector<10x1xf32>
    %13 = math.rsqrt %12 : vector<10x1xf32>
    %14 = vector.broadcast %7 : vector<2x1xf32> to vector<2x32xf32>
    %15 = arith.mulf %0, %14 : vector<2x32xf32>
    %16 = vector.broadcast %13 : vector<10x1xf32> to vector<10x32xf32>
    %17 = arith.mulf %1, %16 : vector<10x32xf32>
    %cst_6 = arith.constant dense<0.000000e+00> : vector<2x10xf32>
    %18 = tpu.matmul %15, %17, %cst_6 {dimension_numbers = #tpu.dot_dimension_numbers<[1], [1], [0], [0], [0, 0, 1, 0], [], []>} : vector<2x32xf32>, vector<10x32xf32>, vector<2x10xf32> -> vector<2x10xf32>
    %cst_7 = arith.constant 1.000000e+00 : f32
    %19 = vector.broadcast %cst_7 : f32 to vector<2x10xf32>
    %20 = arith.subf %19, %18 : vector<2x10xf32>
    %21 = tpu.iota {dimensions = array<i32: 1>} : vector<2x10xi32>
    %cst_8 = arith.constant dense<0x7F800000> : vector<2xf32>
    %22 = vector.multi_reduction <minimumf>, %20, %cst_8 [1] : vector<2x10xf32> to vector<2xf32>
    %23 = vector.shape_cast %22 : vector<2xf32> to vector<2x1xf32>
    %24 = vector.broadcast %23 : vector<2x1xf32> to vector<2x10xf32>
    %25 = arith.cmpf oeq, %20, %24 : vector<2x10xf32>
    %c10_i32 = arith.constant 10 : i32
    %26 = vector.broadcast %c10_i32 : i32 to vector<2x10xi32>
    %27 = arith.select %25, %21, %26 : vector<2x10xi1>, vector<2x10xi32>
    %cst_9 = arith.constant dense<2147483647> : vector<2xi32>
    %28 = vector.multi_reduction <minsi>, %27, %cst_9 [1] : vector<2x10xi32> to vector<2xi32>
    %29 = vector.shape_cast %28 : vector<2xi32> to vector<2x1xi32>
    %30 = vector.broadcast %29 : vector<2x1xi32> to vector<2x10xi32>
    %31 = arith.cmpi eq, %21, %30 : vector<2x10xi32>
    %32 = arith.extui %31 : vector<2x10xi1> to vector<2x10xi32>
    %33 = arith.sitofp %32 : vector<2x10xi32> to vector<2x10xf32>
    %cst_10 = arith.constant 0x7F800000 : f32
    %34 = vector.broadcast %cst_10 : f32 to vector<2x10xf32>
    %35 = arith.select %31, %34, %20 : vector<2x10xi1>, vector<2x10xf32>
    %cst_11 = arith.constant dense<0x7F800000> : vector<2xf32>
    %36 = vector.multi_reduction <minimumf>, %35, %cst_11 [1] : vector<2x10xf32> to vector<2xf32>
    %37 = vector.shape_cast %36 : vector<2xf32> to vector<2x1xf32>
    %38 = vector.broadcast %37 : vector<2x1xf32> to vector<2x10xf32>
    %39 = arith.cmpf oeq, %35, %38 : vector<2x10xf32>
    %c10_i32_12 = arith.constant 10 : i32
    %40 = vector.broadcast %c10_i32_12 : i32 to vector<2x10xi32>
    %41 = arith.select %39, %21, %40 : vector<2x10xi1>, vector<2x10xi32>
    %cst_13 = arith.constant dense<2147483647> : vector<2xi32>
    %42 = vector.multi_reduction <minsi>, %41, %cst_13 [1] : vector<2x10xi32> to vector<2xi32>
    %43 = vector.shape_cast %42 : vector<2xi32> to vector<2x1xi32>
    %44 = vector.broadcast %43 : vector<2x1xi32> to vector<2x10xi32>
    %45 = arith.cmpi eq, %21, %44 : vector<2x10xi32>
    %46 = arith.extui %45 : vector<2x10xi1> to vector<2x10xi32>
    %47 = arith.sitofp %46 : vector<2x10xi32> to vector<2x10xf32>
    %cst_14 = arith.constant 0x7F800000 : f32
    %48 = vector.broadcast %cst_14 : f32 to vector<2x10xf32>
    %49 = arith.select %45, %48, %35 : vector<2x10xi1>, vector<2x10xf32>
    %cst_15 = arith.constant dense<0x7F800000> : vector<2xf32>
    %50 = vector.multi_reduction <minimumf>, %49, %cst_15 [1] : vector<2x10xf32> to vector<2xf32>
    %51 = vector.shape_cast %50 : vector<2xf32> to vector<2x1xf32>
    %52 = vector.broadcast %51 : vector<2x1xf32> to vector<2x10xf32>
    %53 = arith.cmpf oeq, %49, %52 : vector<2x10xf32>
    %c10_i32_16 = arith.constant 10 : i32
    %54 = vector.broadcast %c10_i32_16 : i32 to vector<2x10xi32>
    %55 = arith.select %53, %21, %54 : vector<2x10xi1>, vector<2x10xi32>
    %cst_17 = arith.constant dense<2147483647> : vector<2xi32>
    %56 = vector.multi_reduction <minsi>, %55, %cst_17 [1] : vector<2x10xi32> to vector<2xi32>
    %57 = vector.shape_cast %56 : vector<2xi32> to vector<2x1xi32>
    %58 = vector.broadcast %57 : vector<2x1xi32> to vector<2x10xi32>
    %59 = arith.cmpi eq, %21, %58 : vector<2x10xi32>
    %60 = arith.extui %59 : vector<2x10xi1> to vector<2x10xi32>
    %61 = arith.sitofp %60 : vector<2x10xi32> to vector<2x10xf32>
    %cst_18 = arith.constant 0x7F800000 : f32
    %62 = vector.broadcast %cst_18 : f32 to vector<2x10xf32>
    %63 = arith.select %59, %62, %49 : vector<2x10xi1>, vector<2x10xf32>
    %cst_19 = arith.constant dense<0x7F800000> : vector<2xf32>
    %64 = vector.multi_reduction <minimumf>, %63, %cst_19 [1] : vector<2x10xf32> to vector<2xf32>
    %65 = vector.shape_cast %64 : vector<2xf32> to vector<2x1xf32>
    %66 = vector.broadcast %65 : vector<2x1xf32> to vector<2x10xf32>
    %67 = arith.cmpf oeq, %63, %66 : vector<2x10xf32>
    %c10_i32_20 = arith.constant 10 : i32
    %68 = vector.broadcast %c10_i32_20 : i32 to vector<2x10xi32>
    %69 = arith.select %67, %21, %68 : vector<2x10xi1>, vector<2x10xi32>
    %cst_21 = arith.constant dense<2147483647> : vector<2xi32>
    %70 = vector.multi_reduction <minsi>, %69, %cst_21 [1] : vector<2x10xi32> to vector<2xi32>
    %71 = vector.shape_cast %70 : vector<2xi32> to vector<2x1xi32>
    %72 = vector.broadcast %71 : vector<2x1xi32> to vector<2x10xi32>
    %73 = arith.cmpi eq, %21, %72 : vector<2x10xi32>
    %74 = arith.extui %73 : vector<2x10xi1> to vector<2x10xi32>
    %75 = arith.sitofp %74 : vector<2x10xi32> to vector<2x10xf32>
    %76 = tpu.concatenate %23, %37, %51, %65 in 1 : vector<2x1xf32>, vector<2x1xf32>, vector<2x1xf32>, vector<2x1xf32> -> vector<2x4xf32>
    %c0_22 = arith.constant 0 : index
    %c0_23 = arith.constant 0 : index
    %77 = vector.load %arg3[%c0_22, %c0_23] : memref<2x4xf32, #tpu.memory_space<vmem>>, vector<2x4xf32>
    tpu.vector_store %arg3[%c0_22, %c0_23], %76 {strides = array<i32>} : memref<2x4xf32, #tpu.memory_space<vmem>>, vector<2x4xf32>,
    %78 = tpu.concatenate %33, %47, %61, %75 in 0 : vector<2x10xf32>, vector<2x10xf32>, vector<2x10xf32>, vector<2x10xf32> -> vector<8x10xf32>
    %cst_24 = arith.constant dense<0.000000e+00> : vector<10xf32>
    %79 = vector.multi_reduction <add>, %78, %cst_24 [0] : vector<8x10xf32> to vector<10xf32>
    %80 = vector.shape_cast %79 : vector<10xf32> to vector<1x10xf32>
    %c0_25 = arith.constant 0 : index
    %c0_26 = arith.constant 0 : index
    %81 = vector.load %arg5[%c0_25, %c0_26] : memref<1x10xf32, #tpu.memory_space<vmem>>, vector<1x10xf32>
    tpu.vector_store %arg5[%c0_25, %c0_26], %80 {strides = array<i32>} : memref<1x10xf32, #tpu.memory_space<vmem>>, vector<1x10xf32>,
    %c0_27 = arith.constant 0 : index
    %c0_28 = arith.constant 0 : index
    %82 = vector.load %arg2[%c0_27, %c0_28] : memref<10x160xf32, #tpu.memory_space<vmem>>, vector<10x160xf32>
    %cst_29 = arith.constant dense<0.000000e+00> : vector<8x160xf32>
    %83 = tpu.matmul %78, %82, %cst_29 {dimension_numbers = #tpu.dot_dimension_numbers<[1], [0], [0], [1], [0, 0, 1, 1], [], []>} : vector<8x10xf32>, vector<10x160xf32>, vector<8x160xf32> -> vector<8x160xf32>
    %c0_30 = arith.constant 0 : index
    %c0_31 = arith.constant 0 : index
    %84 = vector.load %arg4[%c0_30, %c0_31] : memref<8x160xf32, #tpu.memory_space<vmem>>, vector<8x160xf32>
    tpu.vector_store %arg4[%c0_30, %c0_31], %83 {strides = array<i32>} : memref<8x160xf32, #tpu.memory_space<vmem>>, vector<8x160xf32>,
    return
  }
}

</mosaic_0001>

<llo_original>
// kernel: prompt_forward.1
$region0: #{prompt_forward.1}
  #allocation0 [shape = 'u32[]', space=smem, size = 0x4, offset = 0x4, fixed_abs, tag = 'smem constant byte address 0x4 - core index']
  #allocation1 [shape = 'u32[72,128]{1,0:T(1,128)}', space=vmem, size = 0x9000, scoped, tag = 'internal scratch']
  %s0 = inlined_call_operand.vmem [shape: f32[2,32], index: 0, kind: input, shape index: {}]
  %s1 = inlined_call_operand.vmem [shape: f32[10,32], index: 1, kind: input, shape index: {}]
  %s2 = inlined_call_operand.vmem [shape: f32[10,160], index: 2, kind: input, shape index: {}]
  %s3 = inlined_call_operand.hbm [shape: f32[2,4], index: 3, kind: output, shape index: {0}]
  %s4 = inlined_call_operand.vmem [shape: f32[8,160], index: 4, kind: output, shape index: {1}]
  %s5 = inlined_call_operand.hbm [shape: f32[1,10], index: 5, kind: output, shape index: {2}]
  %6 = xla_tuple %s3, %s4, %s5
  %s7 = sld [smem:[#allocation0]]
  $region38: #{prompt_forward.1} parent=0
    _
  %s9 = ssub.s32 1, %s7
  %s10 = scalar_select 0, %s9, %s7
  $region1: #{prompt_forward.1} parent=0
    #allocation2 [shape = 'u8[1024]{0}', space=vmem, size = 0x400, scoped, tag = 'output window, operand 0, single buffered']
    #allocation3 [shape = 's32[1]{0}', space=sflag, size = 0x4, scoped, tag = 'scoped memory for prompt_forward.1']
    #allocation4 [shape = 'u8[512]{0}', space=vmem, size = 0x400, scoped, tag = 'output window, operand 2, single buffered']
    #allocation5 [shape = 's32[1]{0}', space=sflag, size = 0x4, scoped, tag = 'scoped memory for prompt_forward.1']
    %11 = vsyncpa [#allocation3], 0
    %12 = vsyncpa [#allocation5], 0
    // Predicated region
    $region2: #{prompt_forward.1} parent=1 // pred_check
      _
    $region3: #{prompt_forward.1} parent=1 // pred_check_branch
      %14 = sbr.rel (0) target = $region5
    $region4: #{prompt_forward.1} parent=1 // pred_region
      _
    $region5: #{prompt_forward.1} parent=1 // pred_fallthru
      _
    // Predicated region
    $region6: #{prompt_forward.1} parent=1 // pred_check
      _
    $region7: #{prompt_forward.1} parent=1 // pred_check_branch
      %16 = sbr.rel (0) target = $region9
    $region8: #{prompt_forward.1} parent=1 // pred_region
      _
    $region9: #{prompt_forward.1} parent=1 // pred_fallthru
      _
    // Predicated region
    $region10: #{prompt_forward.1} parent=1 // pred_check
      _
    $region11: #{prompt_forward.1} parent=1 // pred_check_branch
      %18 = sbr.rel (0) target = $region13
    $region12: #{prompt_forward.1} parent=1 // pred_region
      _
    $region13: #{prompt_forward.1} parent=1 // pred_fallthru
      _
    %v19 = vld [vmem:[%s0] sm:$0x3]
    %v20 = vld [vmem:[%s1] sm:$0xff]
    %v21 = vld [vmem:[%s1 + $0x8] sm:$0x3]
    %v22 = vmul.f32 %v19, %v19
    %vm23 = vcmask 254976
    %v24 = vsel %vm23, %v22, 0.0
    %25 = vadd.xlane.f32.xlu0 %v24
    %v26 = vpop.xlane.xlu0 %25
    %v27 = vmax.f32 %v26, 1e-16
    %v28 = vrsqrt.pop %v27
    %v29 = vmul.f32 %v28, %v27
    %v30 = vmul.f32 %v29, %v28
    %v31 = vmul.f32 0.5, %v30
    %v32 = vsub.f32 1.5, %v31
    %v33 = vmul.f32 %v28, %v32
    %vm34 = vweird.f32 %v27
    %vm35 = vweird.f32 %v28
    %vm36 = vmor %vm34, %vm35
    %v37 = vsel %vm36, %v28, %v33
    %v38 = vmul.f32 %v20, %v20
    %v39 = vmul.f32 %v21, %v21
    %vm40 = vcmask 261120
    %v41 = vsel %vm40, %v38, 0.0
    %42 = vadd.xlane.f32.xlu0 %v41
    %v43 = vpop.xlane.xlu0 %42
    %v44 = vsel %vm23, %v39, 0.0
    %45 = vadd.xlane.f32.xlu0 %v44
    %v46 = vpop.xlane.xlu0 %45
    %v47 = vmax.f32 %v43, 1e-16
    %v48 = vmax.f32 %v46, 1e-16
    %v49 = vrsqrt.pop %v47
    %v50 = vmul.f32 %v49, %v47
    %v51 = vmul.f32 %v50, %v49
    %v52 = vmul.f32 0.5, %v51
    %v53 = vsub.f32 1.5, %v52
    %v54 = vmul.f32 %v49, %v53
    %vm55 = vweird.f32 %v47
    %vm56 = vweird.f32 %v49
    %vm57 = vmor %vm55, %vm56
    %v58 = vsel %vm57, %v49, %v54
    %v59 = vrsqrt.pop %v48
    %v60 = vmul.f32 %v59, %v48
    %v61 = vmul.f32 %v60, %v59
    %v62 = vmul.f32 0.5, %v61
    %v63 = vsub.f32 1.5, %v62
    %v64 = vmul.f32 %v59, %v63
    %vm65 = vweird.f32 %v48
    %vm66 = vweird.f32 %v59
    %vm67 = vmor %vm65, %vm66
    %v68 = vsel %vm67, %v59, %v64
    %v69 = vmul.f32 %v19, %v37
    %v70 = vmul.f32 %v20, %v58
    %v71 = vmul.f32 %v21, %v68
    %v73 = vsel %vm40, %v69, 0
    %v76 = vsel %vm40, %v70, 0
    %v79 = vsel %vm40, %v71, 0
    %81 = vmatpush.xpose.msra.mxu0 0.0
    %82 = vmatpush.xpose.msra.mxu0 0.0
    %83 = vmatpush.xpose.msra.mxu0 0.0
    %84 = vmatpush.xpose.msra.mxu0 0.0
    %85 = vmatpush.xpose.msra.mxu0 0.0
    %86 = vmatpush.xpose.msra.mxu0 0.0
    %87 = vmatpush.xpose.msra.mxu0 0.0
    %88 = vmatpush.xpose.msra.mxu0 0.0
    %89 = vmatpush.xpose.msra.mxu0 0.0
    %90 = vmatpush.xpose.msra.mxu0 0.0
    %91 = vmatpush.xpose.msra.mxu0 0.0
    %92 = vmatpush.xpose.msra.mxu0 0.0
    %93 = vmatpush.xpose.msra.mxu0 0.0
    %94 = vmatpush.xpose.msra.mxu0 0.0
    %95 = vmatpush.xpose.msra.mxu0 %v79
    %96 = vmatpush.xpose.msra.mxu0 %v76
    %97 = vmatmul.f32.gmra.mxu0 %v73
    %v98 = vpop.f32.mrf.mxu0
    %v99 = vadd.f32 0.0, %v98
    %100 = vdwg.mxu0
    %v101 = vsub.f32 1.0, %v99
    %v102 = vlaneseq
    %v103 = vand.u32 %v102, 127
    %vm104 = vcmask 74752
    %v105 = vsel %vm104, %v101, inf
    %106 = vmin.xlane.f32.xlu0 %v105
    %v107 = vpop.xlane.xlu0 %106
    %vm108 = vcmp.eq.f32.partialorder %v101, %v107
    %v109 = vsel %vm108, %v103, 10
    %v110 = vsel %vm104, %v109, 2147483647
    %v111 = vand.u32 %v110, 65535
    %v112 = vshra.s32 %v110, 16
    %v113 = vcvt.s32.f32 %v111
    %v114 = vcvt.s32.f32 %v112
    %115 = vmin.xlane.f32.xlu0 %v114
    %v116 = vpop.xlane.xlu0 %115
    %vm117 = vcmp.eq.f32.partialorder %v114, %v116
    %v118 = vsel %vm117, %v113, inf
    %119 = vmin.xlane.f32.xlu0 %v118
    %v120 = vpop.xlane.xlu0 %119
    %v121 = vcvt.f32.s32 %v120
    %v122 = vcvt.f32.s32 %v116
    %v123 = vshll.u32 %v122, 16
    %v124 = vadd.s32 %v123, %v121
    %vm125 = vcmp.eq.s32.totalorder %v103, %v124
    %v126 = vsel %vm125, 1, 0
    %v127 = vcvt.s32.f32 %v126
    %v128 = vsel %vm125, inf, %v101
    %v129 = vsel %vm104, %v128, inf
    %130 = vmin.xlane.f32.xlu0 %v129
    %v131 = vpop.xlane.xlu0 %130
    %vm132 = vcmp.eq.f32.partialorder %v128, %v131
    %v133 = vsel %vm132, %v103, 10
    %v134 = vsel %vm104, %v133, 2147483647
    %v135 = vand.u32 %v134, 65535
    %v136 = vshra.s32 %v134, 16
    %v137 = vcvt.s32.f32 %v135
    %v138 = vcvt.s32.f32 %v136
    %139 = vmin.xlane.f32.xlu0 %v138
    %v140 = vpop.xlane.xlu0 %139
    %vm141 = vcmp.eq.f32.partialorder %v138, %v140
    %v142 = vsel %vm141, %v137, inf
    %143 = vmin.xlane.f32.xlu0 %v142
    %v144 = vpop.xlane.xlu0 %143
    %v145 = vcvt.f32.s32 %v144
    %v146 = vcvt.f32.s32 %v140
    %v147 = vshll.u32 %v146, 16
    %v148 = vadd.s32 %v147, %v145
    %vm149 = vcmp.eq.s32.totalorder %v103, %v148
    %v150 = vsel %vm149, 1, 0
    %v151 = vcvt.s32.f32 %v150
    %v152 = vsel %vm149, inf, %v128
    %v153 = vsel %vm104, %v152, inf
    %154 = vmin.xlane.f32.xlu0 %v153
    %v155 = vpop.xlane.xlu0 %154
    %vm156 = vcmp.eq.f32.partialorder %v152, %v155
    %v157 = vsel %vm156, %v103, 10
    %v158 = vsel %vm104, %v157, 2147483647
    %v159 = vand.u32 %v158, 65535
    %v160 = vshra.s32 %v158, 16
    %v161 = vcvt.s32.f32 %v159
    %v162 = vcvt.s32.f32 %v160
    %163 = vmin.xlane.f32.xlu0 %v162
    %v164 = vpop.xlane.xlu0 %163
    %vm165 = vcmp.eq.f32.partialorder %v162, %v164
    %v166 = vsel %vm165, %v161, inf
    %167 = vmin.xlane.f32.xlu0 %v166
    %v168 = vpop.xlane.xlu0 %167
    %v169 = vcvt.f32.s32 %v168
    %v170 = vcvt.f32.s32 %v164
    %v171 = vshll.u32 %v170, 16
    %v172 = vadd.s32 %v171, %v169
    %vm173 = vcmp.eq.s32.totalorder %v103, %v172
    %v174 = vsel %vm173, 1, 0
    %v175 = vcvt.s32.f32 %v174
    %v176 = vsel %vm173, inf, %v152
    %v177 = vsel %vm104, %v176, inf
    %178 = vmin.xlane.f32.xlu0 %v177
    %v179 = vpop.xlane.xlu0 %178
    %vm180 = vcmp.eq.f32.partialorder %v176, %v179
    %v181 = vsel %vm180, %v103, 10
    %v182 = vsel %vm104, %v181, 2147483647
    %v183 = vand.u32 %v182, 65535
    %v184 = vshra.s32 %v182, 16
    %v185 = vcvt.s32.f32 %v183
    %v186 = vcvt.s32.f32 %v184
    %187 = vmin.xlane.f32.xlu0 %v186
    %v188 = vpop.xlane.xlu0 %187
    %vm189 = vcmp.eq.f32.partialorder %v186, %v188
    %v190 = vsel %vm189, %v185, inf
    %191 = vmin.xlane.f32.xlu0 %v190
    %v192 = vpop.xlane.xlu0 %191
    %v193 = vcvt.f32.s32 %v192
    %v194 = vcvt.f32.s32 %v188
    %v195 = vshll.u32 %v194, 16
    %v196 = vadd.s32 %v195, %v193
    %vm197 = vcmp.eq.s32.totalorder %v103, %v196
    %v198 = vsel %vm197, 1, 0
    %v199 = vcvt.s32.f32 %v198
    %vm200 = vcmask 7168
    %v201 = vsel %vm200, %v107, %v131
    %vm202 = vcmask 15360
    %v203 = vsel %vm202, %v201, %v155
    %vm204 = vcmask 23552
    %v205 = vsel %vm204, %v203, %v179
    %vm206 = vcmask 25600
    %207 = vst.msk [vmem:[#allocation2] sm:$0x3] %vm206, %v205
    %v209 = vrot.slane %v151, 6
    %v212 = vrot.slane %v175, 4
    %v215 = vrot.slane %v199, 2
    %vm217 = vcmask 1041408
    %v218 = vsel %vm217, %v127, %v209
    %vm219 = vcmask 1043456
    %v220 = vsel %vm219, %v218, %v212
    %vm221 = vcmask 1045504
    %v222 = vsel %vm221, %v220, %v215
    %vm223 = vcmask 80896
    %v224 = vsel %vm223, %v222, 0.0
    %v225 = vrot.slane %v224, 4
    %v226 = vadd.f32 %v224, %v225
    %v227 = vrot.slane %v226, 2
    %v228 = vadd.f32 %v226, %v227
    %v229 = vrot.slane %v228, 1
    %v230 = vadd.f32 %v228, %v229
    %vm231 = vcmask 73728
    %232 = vst.msk [vmem:[#allocation4] sm:$0x1] %vm231, %v230
    %v233 = vld [vmem:[%s2] sm:$0xff]
    %v234 = vld [vmem:[%s2 + $0x8] sm:$0xff]
    %v235 = vld [vmem:[%s2 + $0x10] sm:$0x3]
    %v236 = vld [vmem:[%s2 + $0x18] sm:$0x3]
    %v238 = vsel %vm223, %v222, 0
    %v241 = vsel %vm217, %v235, 0
    %v244 = vsel %vm217, %v236, 0
    %246 = vmatpush.msra.mxu0 0.0
    %247 = vmatpush.msra.mxu0 0.0
    %248 = vmatpush.msra.mxu0 0.0
    %249 = vmatpush.msra.mxu0 0.0
    %250 = vmatpush.msra.mxu0 0.0
    %251 = vmatpush.msra.mxu0 0.0
    %252 = vmatpush.msra.mxu0 0.0
    %253 = vmatpush.msra.mxu0 0.0
    %254 = vmatpush.msra.mxu0 0.0
    %255 = vmatpush.msra.mxu0 0.0
    %256 = vmatpush.msra.mxu0 0.0
    %257 = vmatpush.msra.mxu0 0.0
    %258 = vmatpush.msra.mxu0 0.0
    %259 = vmatpush.msra.mxu0 0.0
    %260 = vmatpush.msra.mxu0 %v241
    %261 = vmatpush.msra.mxu0 %v233
    %262 = vmatmul.f32.gmra.mxu0 %v238
    %v263 = vpop.f32.mrf.mxu0
    %v264 = vadd.f32 0.0, %v263
    %265 = vdwg.mxu0
    %266 = vmatpush.msra.mxu0 0.0
    %267 = vmatpush.msra.mxu0 0.0
    %268 = vmatpush.msra.mxu0 0.0
    %269 = vmatpush.msra.mxu0 0.0
    %270 = vmatpush.msra.mxu0 0.0
    %271 = vmatpush.msra.mxu0 0.0
    %272 = vmatpush.msra.mxu0 0.0
    %273 = vmatpush.msra.mxu0 0.0
    %274 = vmatpush.msra.mxu0 0.0
    %275 = vmatpush.msra.mxu0 0.0
    %276 = vmatpush.msra.mxu0 0.0
    %277 = vmatpush.msra.mxu0 0.0
    %278 = vmatpush.msra.mxu0 0.0
    %279 = vmatpush.msra.mxu0 0.0
    %280 = vmatpush.msra.mxu0 %v244
    %281 = vmatpush.msra.mxu0 %v234
    %282 = vmatmul.f32.gmra.mxu0 %v238
    %v283 = vpop.f32.mrf.mxu0
    %v284 = vadd.f32 0.0, %v283
    %285 = vdwg.mxu0
    %286 = vst [vmem:[%s4] sm:$0xff] %v264
    %287 = vst.msk [vmem:[%s4 + $0x8] sm:$0xff] %vm40, %v284
    // Predicated region
    $region14: #{prompt_forward.1} parent=1 // pred_check
      _
    $region15: #{prompt_forward.1} parent=1 // pred_check_branch
      %289 = sbr.rel (0) target = $region17
    $region16: #{prompt_forward.1} parent=1 // pred_region
      %291 = vsyncadd [#allocation3], 0
      %s293 = sshll.u32 [#allocation2], 4
      %s294 = int_to_ptr.vmem [resolvable:$true] %s293
      %s295 = sshll.u32 %s3, 4
      %s296 = int_to_ptr.hbm [resolvable:$true] %s295
      %298 = dma.vmem_to_hbm [thread:$0]  %s294, 32, %s296, [#allocation3]
    $region17: #{prompt_forward.1} parent=1 // pred_fallthru
      _
    // Predicated region
    $region18: #{prompt_forward.1} parent=1 // pred_check
      _
    $region19: #{prompt_forward.1} parent=1 // pred_check_branch
      %300 = sbr.rel (0) target = $region21
    $region20: #{prompt_forward.1} parent=1 // pred_region
      _
    $region21: #{prompt_forward.1} parent=1 // pred_fallthru
      _
    // Predicated region
    $region22: #{prompt_forward.1} parent=1 // pred_check
      _
    $region23: #{prompt_forward.1} parent=1 // pred_check_branch
      %302 = sbr.rel (0) target = $region25
    $region24: #{prompt_forward.1} parent=1 // pred_region
      %304 = vsyncadd [#allocation5], 0
      %s306 = sshll.u32 [#allocation4], 4
      %s307 = int_to_ptr.vmem [resolvable:$true] %s306
      %s308 = sshll.u32 %s5, 4
      %s309 = int_to_ptr.hbm [resolvable:$true] %s308
      %311 = dma.vmem_to_hbm [thread:$0]  %s307, 16, %s309, [#allocation5]
    $region25: #{prompt_forward.1} parent=1 // pred_fallthru
      _
    // Predicated region
    $region26: #{prompt_forward.1} parent=1 // pred_check
      _
    $region27: #{prompt_forward.1} parent=1 // pred_check_branch
      %313 = sbr.rel (0) target = $region29
    $region28: #{prompt_forward.1} parent=1 // pred_region
      %315 = dma.done [#allocation3], 32
    $region29: #{prompt_forward.1} parent=1 // pred_fallthru
      _
    // Predicated region
    $region30: #{prompt_forward.1} parent=1 // pred_check
      _
    $region31: #{prompt_forward.1} parent=1 // pred_check_branch
      %317 = sbr.rel (0) target = $region33
    $region32: #{prompt_forward.1} parent=1 // pred_region
      _
    $region33: #{prompt_forward.1} parent=1 // pred_fallthru
      _
    // Predicated region
    $region34: #{prompt_forward.1} parent=1 // pred_check
      _
    $region35: #{prompt_forward.1} parent=1 // pred_check_branch
      %319 = sbr.rel (0) target = $region37
    $region36: #{prompt_forward.1} parent=1 // pred_region
      %321 = dma.done [#allocation5], 16
    $region37: #{prompt_forward.1} parent=1 // pred_fallthru
      _
    %322 = vsyncpa [#allocation3], 1
    %323 = vsyncpa [#allocation5], 1

</llo_original>
